<compile_context>
chip_gen: v7x
topology: tpu7x:2x2x1
jax: 0.10.0
libtpu: 0.0.40
codegen_flags: <defaults>
</compile_context>

<pallas_src>
import math

import jax
import jax.numpy as jnp
from jax.experimental import pallas as pl
from jax.experimental.pallas import tpu as pltpu


_LANE_CHUNK = 512  # in-kernel sub-tile width (lanes); multiple of 128


def _round_up(x, m):
    return (x + m - 1) // m * m


def _choose_tile(n, requested_tile):
    """Pick the lane tile: as large as requested (amortize per-grid-step
    overhead), but keep >= 4 grid steps on big batches (v7x megacore split)
    and never below one 512-lane chunk."""
    req = max(_LANE_CHUNK, _round_up(requested_tile, _LANE_CHUNK))
    n_c = _round_up(max(n, 1), _LANE_CHUNK)
    tile = min(req, n_c)
    if n_c // tile < 4:
        alt = (n_c // 4) // _LANE_CHUNK * _LANE_CHUNK
        if alt >= 2048:  # don't shrink below 2048 lanes just for step count
            tile = min(tile, alt)
    return tile


def _polarnet_kernel(x_ref, w1_ref, b1_ref, w2_ref, b2_ref, out_ref):
    # x_ref : (2, TILE_N)   rows [r; a], batch on lanes (lane-dense)
    # w1_ref: (H, 2)        in_to_hid.weight   (resident, constant index_map)
    # b1_ref: (H, 1)        in_to_hid.bias as a column
    # w2_ref: (H, 1)        hid_to_out.weight transposed to a column
    # b2_ref: (1,)          hid_to_out.bias, SMEM scalar
    # out_ref: (1, TILE_N)  lane-dense -> unmasked vector stores
    w1r = w1_ref[:, 0:1]           # (H, 1)
    w1a = w1_ref[:, 1:2]           # (H, 1)
    b1 = b1_ref[...]               # (H, 1)
    w2 = w2_ref[...]               # (H, 1)
    b2 = b2_ref[0]                 # scalar

    tile = x_ref.shape[1]
    num_chunks = tile // _LANE_CHUNK  # static; tile is a multiple of 512

    # Fully-unrolled static loop over 512-lane sub-chunks: the live (H, 512)
    # hidden block is only ~16 vregs, so the big DMA tile never spills.
    for c in range(num_chunks):
        s = c * _LANE_CHUNK
        r = x_ref[0:1, s:s + _LANE_CHUNK]          # (1, C)
        a = x_ref[1:2, s:s + _LANE_CHUNK]          # (1, C)

        # Layer 1: broadcast FMAs on the VPU (K=2, no MXU), tanh on the EUP.
        hid = jnp.tanh(w1r * r + w1a * a + b1)     # (H, C)

        # Layer 2: length-H sublane reduction instead of a degenerate matmul.
        logit = jnp.sum(hid * w2, axis=0, keepdims=True) + b2   # (1, C)

        # Sigmoid: exp + approx reciprocal ride the EUP; one Newton step on the
        # VPU restores ~f32 accuracy without a full divide chain.
        d = 1.0 + jnp.exp(-logit)
        inv = pl.reciprocal(d, approx=True)
        inv = inv * (2.0 - d * inv)
        out_ref[:, s:s + _LANE_CHUNK] = inv


def polarnet_forward(cart_input, w1, b1, w2, b2, *, tile_n=8192):
    """cart_input: (N, 2) float32 of (x, y). Returns (N, 1) float32 sigmoid output."""
    n = cart_input.shape[0]
    num_hid = w1.shape[0]

    # Cartesian -> polar (mirrors the python math loop), emitted directly in
    # the transposed batch-on-lanes layout: the math fuses into the single
    # relayout pass XLA performs anyway, so it adds no extra HBM traffic.
    xs = cart_input[:, 0].astype(jnp.float32)
    ys = cart_input[:, 1].astype(jnp.float32)
    r = jnp.sqrt(xs * xs + ys * ys)
    a = jnp.arctan2(ys, xs)
    polar_t = jnp.stack([r, a], axis=0)            # (2, N)

    tile = _choose_tile(n, tile_n)
    n_pad = _round_up(n, tile)
    if n_pad != n:
        polar_t = jnp.pad(polar_t, ((0, 0), (0, n_pad - n)))
    grid = (n_pad // tile,)

    out_t = pl.pallas_call(
        _polarnet_kernel,
        out_shape=jax.ShapeDtypeStruct((1, n_pad), jnp.float32),
        grid=grid,
        in_specs=[
            pl.BlockSpec((2, tile), lambda i: (0, i)),            # polar tile
            pl.BlockSpec((num_hid, 2), lambda i: (0, 0)),         # W1 (resident)
            pl.BlockSpec((num_hid, 1), lambda i: (0, 0)),         # b1 (resident)
            pl.BlockSpec((num_hid, 1), lambda i: (0, 0)),         # W2 (resident)
            pl.BlockSpec(memory_space=pltpu.MemorySpace.SMEM),    # b2 scalar
        ],
        out_specs=pl.BlockSpec((1, tile), lambda i: (0, i)),
        compiler_params=pltpu.CompilerParams(
            dimension_semantics=("parallel",),
        ),
    )(polar_t, w1, b1, w2, b2)

    return out_t[:, :n].reshape(n, 1)


def init_params(key, num_hid):
    """Deterministic init matching nn.Linear shapes (uniform +/- 1/sqrt(fan_in))."""
    k1, k2, k3, k4 = jax.random.split(key, 4)
    lim1 = 1.0 / math.sqrt(2.0)
    lim2 = 1.0 / math.sqrt(num_hid)
    w1 = jax.random.uniform(k1, (num_hid, 2), jnp.float32, -lim1, lim1)  # in_to_hid.weight
    b1 = jax.random.uniform(k2, (num_hid, 1), jnp.float32, -lim1, lim1)  # in_to_hid.bias
    w2 = jax.random.uniform(k3, (num_hid, 1), jnp.float32, -lim2, lim2)  # hid_to_out.weight^T
    b2 = jax.random.uniform(k4, (1,), jnp.float32, -lim2, lim2)          # hid_to_out.bias
    return w1, b1, w2, b2


def polarnet_reference(cart_input, w1, b1, w2, b2):
    xs = cart_input[:, 0]
    ys = cart_input[:, 1]
    polar = jnp.stack([jnp.sqrt(xs * xs + ys * ys), jnp.arctan2(ys, xs)], axis=-1)
    hid = jnp.tanh(polar @ w1.T + b1[:, 0])       # (N, H)
    return jax.nn.sigmoid(hid @ w2 + b2)          # (N, 1)


if __name__ == "__main__":
    key = jax.random.PRNGKey(0)
    k_in, k_param, k_big = jax.random.split(key, 3)

    num_hid = 32
    w1, b1, w2, b2 = init_params(k_param, num_hid)

    # Small batch (single tile, single chunk).
    batch = 8
    cart = jax.random.normal(k_in, (batch, 2), dtype=jnp.float32)
    out = jax.block_until_ready(polarnet_forward(cart, w1, b1, w2, b2))
    ref = polarnet_reference(cart, w1, b1, w2, b2)
    assert out.shape == (batch, 1), out.shape
    # Tolerance loosened from 1e-5 to 1e-4 to cover the approx EUP reciprocal
    # (+ Newton step) used for the sigmoid.
    assert jnp.allclose(out, ref, atol=1e-4, rtol=1e-4), (out, ref)

    # Larger odd-sized batch: exercises padding, multi-chunk and multi-tile grid.
    big = 40000
    cart_big = jax.random.normal(k_big, (big, 2), dtype=jnp.float32)
    out_big = jax.block_until_ready(polarnet_forward(cart_big, w1, b1, w2, b2))
    ref_big = polarnet_reference(cart_big, w1, b1, w2, b2)
    assert out_big.shape == (big, 1), out_big.shape
    assert jnp.allclose(out_big, ref_big, atol=1e-4, rtol=1e-4)

    print("KERNEL_OK")
</pallas_src>

<mosaic_0001>
module attributes {stable_mosaic.version = 11 : i64} {
  func.func @_polarnet_kernel(%arg0: i32, %arg1: memref<2x512xf32, #tpu.memory_space<vmem>>, %arg2: memref<32x2xf32, #tpu.memory_space<vmem>>, %arg3: memref<32x1xf32, #tpu.memory_space<vmem>>, %arg4: memref<32x1xf32, #tpu.memory_space<vmem>>, %arg5: memref<1xf32, #tpu.memory_space<smem>>, %arg6: memref<1x512xf32, #tpu.memory_space<vmem>>) attributes {dimension_semantics = [#tpu.dimension_semantics<parallel>], iteration_bounds = array<i64: 1>, scalar_prefetch = 0 : i64, scratch_operands = 0 : i64, tpu.core_type = #tpu.core_type<tc>, window_params = [{transform_indices = @transform_0, window_bounds = array<i64: 2, 512>}, {pipeline_mode = #tpu.pipeline_mode<synchronous>, transform_indices = @transform_1, window_bounds = array<i64: 32, 2>}, {pipeline_mode = #tpu.pipeline_mode<synchronous>, transform_indices = @transform_2, window_bounds = array<i64: 32, 1>}, {pipeline_mode = #tpu.pipeline_mode<synchronous>, transform_indices = @transform_3, window_bounds = array<i64: 32, 1>}, {transform_indices = @transform_4, window_bounds = array<i64: 1>}, {transform_indices = @transform_5, window_bounds = array<i64: 1, 512>}]} {
    %c0 = arith.constant 0 : index
    %c0_0 = arith.constant 0 : index
    %0 = vector.load %arg2[%c0, %c0_0] : memref<32x2xf32, #tpu.memory_space<vmem>>, vector<32x1xf32>
    %c0_1 = arith.constant 0 : index
    %c1 = arith.constant 1 : index
    %1 = vector.load %arg2[%c0_1, %c1] : memref<32x2xf32, #tpu.memory_space<vmem>>, vector<32x1xf32>
    %c0_2 = arith.constant 0 : index
    %c0_3 = arith.constant 0 : index
    %2 = vector.load %arg3[%c0_2, %c0_3] : memref<32x1xf32, #tpu.memory_space<vmem>>, vector<32x1xf32>
    %c0_4 = arith.constant 0 : index
    %c0_5 = arith.constant 0 : index
    %3 = vector.load %arg4[%c0_4, %c0_5] : memref<32x1xf32, #tpu.memory_space<vmem>>, vector<32x1xf32>
    %c0_6 = arith.constant 0 : index
    %4 = memref.load %arg5[%c0_6] : memref<1xf32, #tpu.memory_space<smem>>
    %c0_7 = arith.constant 0 : index
    %c0_8 = arith.constant 0 : index
    %5 = vector.load %arg1[%c0_7, %c0_8] : memref<2x512xf32, #tpu.memory_space<vmem>>, vector<1x512xf32>
    %c1_9 = arith.constant 1 : index
    %c0_10 = arith.constant 0 : index
    %6 = vector.load %arg1[%c1_9, %c0_10] : memref<2x512xf32, #tpu.memory_space<vmem>>, vector<1x512xf32>
    %7 = vector.broadcast %0 : vector<32x1xf32> to vector<32x512xf32>
    %8 = vector.broadcast %5 : vector<1x512xf32> to vector<32x512xf32>
    %9 = arith.mulf %7, %8 : vector<32x512xf32>
    %10 = vector.broadcast %1 : vector<32x1xf32> to vector<32x512xf32>
    %11 = vector.broadcast %6 : vector<1x512xf32> to vector<32x512xf32>
    %12 = arith.mulf %10, %11 : vector<32x512xf32>
    %13 = arith.addf %9, %12 : vector<32x512xf32>
    %14 = vector.broadcast %2 : vector<32x1xf32> to vector<32x512xf32>
    %15 = arith.addf %13, %14 : vector<32x512xf32>
    %16 = math.tanh %15 : vector<32x512xf32>
    %17 = vector.broadcast %3 : vector<32x1xf32> to vector<32x512xf32>
    %18 = arith.mulf %16, %17 : vector<32x512xf32>
    %cst = arith.constant dense<0.000000e+00> : vector<512xf32>
    %19 = vector.multi_reduction <add>, %18, %cst [0] : vector<32x512xf32> to vector<512xf32>
    %20 = vector.shape_cast %19 : vector<512xf32> to vector<1x512xf32>
    %21 = vector.broadcast %4 : f32 to vector<1x512xf32>
    %22 = arith.addf %20, %21 : vector<1x512xf32>
    %cst_11 = arith.constant 0.000000e+00 : f32
    %23 = vector.broadcast %cst_11 : f32 to vector<1x512xf32>
    %24 = arith.subf %23, %22 : vector<1x512xf32>
    %25 = math.exp %24 : vector<1x512xf32>
    %cst_12 = arith.constant 1.000000e+00 : f32
    %26 = vector.broadcast %cst_12 : f32 to vector<1x512xf32>
    %27 = arith.addf %26, %25 : vector<1x512xf32>
    %28 = tpu.reciprocal %27 {approx = true} : vector<1x512xf32> -> vector<1x512xf32>
    %29 = arith.mulf %27, %28 : vector<1x512xf32>
    %cst_13 = arith.constant 2.000000e+00 : f32
    %30 = vector.broadcast %cst_13 : f32 to vector<1x512xf32>
    %31 = arith.subf %30, %29 : vector<1x512xf32>
    %32 = arith.mulf %28, %31 : vector<1x512xf32>
    %c0_14 = arith.constant 0 : index
    %c0_15 = arith.constant 0 : index
    %33 = vector.load %arg6[%c0_14, %c0_15] : memref<1x512xf32, #tpu.memory_space<vmem>>, vector<1x512xf32>
    tpu.vector_store %arg6[%c0_14, %c0_15], %32 {strides = array<i32>} : memref<1x512xf32, #tpu.memory_space<vmem>>, vector<1x512xf32>,
    return
  }
  func.func @transform_0(%arg0: i32) -> (i32, i32) {
    %c0_i32 = arith.constant 0 : i32
    %c0_i32_0 = arith.constant 0 : i32
    return %c0_i32, %arg0 : i32, i32
  }
  func.func @transform_1(%arg0: i32) -> (i32, i32) {
    %c0_i32 = arith.constant 0 : i32
    %c0_i32_0 = arith.constant 0 : i32
    %c0_i32_1 = arith.constant 0 : i32
    return %c0_i32, %c0_i32_0 : i32, i32
  }
  func.func @transform_2(%arg0: i32) -> (i32, i32) {
    %c0_i32 = arith.constant 0 : i32
    %c0_i32_0 = arith.constant 0 : i32
    %c0_i32_1 = arith.constant 0 : i32
    return %c0_i32, %c0_i32_0 : i32, i32
  }
  func.func @transform_3(%arg0: i32) -> (i32, i32) {
    %c0_i32 = arith.constant 0 : i32
    %c0_i32_0 = arith.constant 0 : i32
    %c0_i32_1 = arith.constant 0 : i32
    return %c0_i32, %c0_i32_0 : i32, i32
  }
  func.func @transform_4(%arg0: i32) -> i32 {
    %c0_i32 = arith.constant 0 : i32
    %c0_i32_0 = arith.constant 0 : i32
    return %c0_i32 : i32
  }
  func.func @transform_5(%arg0: i32) -> (i32, i32) {
    %c0_i32 = arith.constant 0 : i32
    %c0_i32_0 = arith.constant 0 : i32
    return %c0_i32, %arg0 : i32, i32
  }
}

</mosaic_0001>

<llo_original>
// kernel: tpu_custom_call.1
$region0: #{tpu_custom_call.1}
  #allocation0 [shape = 'u32[]', space=smem, size = 0x4, offset = 0x4, fixed_abs, tag = 'smem constant byte address 0x4 - core index']
  #allocation1 [shape = 'u32[144,128]{1,0:T(1,128)}', space=vmem, size = 0x12000, scoped, tag = 'internal scratch']
  #allocation2 [shape = 'f32[1]{0:T(128)S(6)}', space=smem, size = 0x200, scoped, tag = 'scoped memory for tpu_custom_call.1']
  %s0 = inlined_call_operand.vmem [shape: f32[2,512], index: 0, kind: input, shape index: {}]
  %s1 = inlined_call_operand.vmem [shape: f32[32,2], index: 1, kind: input, shape index: {}]
  %s2 = inlined_call_operand.vmem [shape: f32[32,1], index: 2, kind: input, shape index: {}]
  %s3 = inlined_call_operand.vmem [shape: f32[32,1], index: 3, kind: input, shape index: {}]
  %s4 = inlined_call_operand.<no memory space> [shape: f32[1], index: 4, kind: input, shape index: {}]
  %s5 = inlined_call_operand.hbm [shape: f32[1,512], index: 5, kind: output, shape index: {}]
  %s6 = sld [smem:[#allocation0]]
  $region30: #{tpu_custom_call.1} parent=0
    _
  %s8 = ssub.s32 1, %s6
  %s9 = scalar_select 0, %s8, %s6
  %10 = sst [smem:[#allocation2]] %s4
  $region1: #{tpu_custom_call.1} parent=0
    #allocation3 [shape = 'u8[2048]{0}', space=vmem, size = 0x800, scoped, tag = 'output window, operand 0, single buffered']
    #allocation4 [shape = 's32[1]{0}', space=sflag, size = 0x4, scoped, tag = 'scoped memory for tpu_custom_call.1']
    %11 = vsyncpa [#allocation4], 0
    // Predicated region
    $region2: #{tpu_custom_call.1} parent=1 // pred_check
      _
    $region3: #{tpu_custom_call.1} parent=1 // pred_check_branch
      %13 = sbr.rel (0) target = $region5
    $region4: #{tpu_custom_call.1} parent=1 // pred_region
      _
    $region5: #{tpu_custom_call.1} parent=1 // pred_fallthru
      _
    // Predicated region
    $region6: #{tpu_custom_call.1} parent=1 // pred_check
      _
    $region7: #{tpu_custom_call.1} parent=1 // pred_check_branch
      %15 = sbr.rel (0) target = $region9
    $region8: #{tpu_custom_call.1} parent=1 // pred_region
      _
    $region9: #{tpu_custom_call.1} parent=1 // pred_fallthru
      _
    // Predicated region
    $region10: #{tpu_custom_call.1} parent=1 // pred_check
      _
    $region11: #{tpu_custom_call.1} parent=1 // pred_check_branch
      %17 = sbr.rel (0) target = $region13
    $region12: #{tpu_custom_call.1} parent=1 // pred_region
      _
    $region13: #{tpu_custom_call.1} parent=1 // pred_fallthru
      _
    // Predicated region
    $region14: #{tpu_custom_call.1} parent=1 // pred_check
      _
    $region15: #{tpu_custom_call.1} parent=1 // pred_check_branch
      %19 = sbr.rel (0) target = $region17
    $region16: #{tpu_custom_call.1} parent=1 // pred_region
      _
    $region17: #{tpu_custom_call.1} parent=1 // pred_fallthru
      _
    // Predicated region
    $region18: #{tpu_custom_call.1} parent=1 // pred_check
      _
    $region19: #{tpu_custom_call.1} parent=1 // pred_check_branch
      %21 = sbr.rel (0) target = $region21
    $region20: #{tpu_custom_call.1} parent=1 // pred_region
      _
    $region21: #{tpu_custom_call.1} parent=1 // pred_fallthru
      _
    %v22 = vld [vmem:[%s1] sm:$0xff]
    %v23 = vld [vmem:[%s1 + $0x8] sm:$0xff]
    %v24 = vld [vmem:[%s1 + $0x10] sm:$0xff]
    %v25 = vld [vmem:[%s1 + $0x18] sm:$0xff]
    %v26 = vld [vmem:[%s2] sm:$0xff]
    %v27 = vld [vmem:[%s2 + $0x8] sm:$0xff]
    %v28 = vld [vmem:[%s2 + $0x10] sm:$0xff]
    %v29 = vld [vmem:[%s2 + $0x18] sm:$0xff]
    %v30 = vld [vmem:[%s3] sm:$0xff]
    %v31 = vld [vmem:[%s3 + $0x8] sm:$0xff]
    %v32 = vld [vmem:[%s3 + $0x10] sm:$0xff]
    %v33 = vld [vmem:[%s3 + $0x18] sm:$0xff]
    %s34 = sld [smem:[#allocation2]]
    %v35 = vld [vmem:[%s0] ss:$2 sm:$0xf]
    %s36 = scalar_lea.vmem %s0, 1
    %v37 = vld [vmem:[%s36] ss:$2 sm:$0xf]
    %39 = vset.pattern.permute.xlu0 0
    %40 = vperm.xlu0 %39, %v22
    %v41 = vpop.permute.xlu0 %40
    %44 = vset.pattern.permute.xlu0 0
    %45 = vperm.xlu0 %44, %v23
    %v46 = vpop.permute.xlu0 %45
    %49 = vset.pattern.permute.xlu0 0
    %50 = vperm.xlu0 %49, %v24
    %v51 = vpop.permute.xlu0 %50
    %54 = vset.pattern.permute.xlu0 0
    %55 = vperm.xlu0 %54, %v25
    %v56 = vpop.permute.xlu0 %55
    %v59 = vlaneseq
    %v60 = vshrl.u32 %v59, 7
    %v61 = vsub.s32 0, %v60
    %v62 = vrot.slane %v35, %v61
    %v63 = vlaneseq
    %v64 = vshrl.u32 %v63, 7
    %v65 = vsub.s32 1, %v64
    %v66 = vrot.slane %v35, %v65
    %v67 = vlaneseq
    %v68 = vshrl.u32 %v67, 7
    %v69 = vsub.s32 2, %v68
    %v70 = vrot.slane %v35, %v69
    %v71 = vlaneseq
    %v72 = vshrl.u32 %v71, 7
    %v73 = vsub.s32 3, %v72
    %v74 = vrot.slane %v35, %v73
    %v79 = vmul.f32 %v41, %v62
    %v80 = vmul.f32 %v41, %v66
    %v81 = vmul.f32 %v41, %v70
    %v82 = vmul.f32 %v41, %v74
    %v83 = vmul.f32 %v46, %v62
    %v84 = vmul.f32 %v46, %v66
    %v85 = vmul.f32 %v46, %v70
    %v86 = vmul.f32 %v46, %v74
    %v87 = vmul.f32 %v51, %v62
    %v88 = vmul.f32 %v51, %v66
    %v89 = vmul.f32 %v51, %v70
    %v90 = vmul.f32 %v51, %v74
    %v91 = vmul.f32 %v56, %v62
    %v92 = vmul.f32 %v56, %v66
    %v93 = vmul.f32 %v56, %v70
    %v94 = vmul.f32 %v56, %v74
    %95 = vset.pattern.permute.xlu0 1
    %96 = vperm.xlu0 %95, %v22
    %v97 = vpop.permute.xlu0 %96
    %99 = vset.pattern.permute.xlu0 1
    %100 = vperm.xlu0 %99, %v23
    %v101 = vpop.permute.xlu0 %100
    %103 = vset.pattern.permute.xlu0 1
    %104 = vperm.xlu0 %103, %v24
    %v105 = vpop.permute.xlu0 %104
    %107 = vset.pattern.permute.xlu0 1
    %108 = vperm.xlu0 %107, %v25
    %v109 = vpop.permute.xlu0 %108
    %v112 = vlaneseq
    %v113 = vshrl.u32 %v112, 7
    %v114 = vsub.s32 0, %v113
    %v115 = vrot.slane %v37, %v114
    %v116 = vlaneseq
    %v117 = vshrl.u32 %v116, 7
    %v118 = vsub.s32 1, %v117
    %v119 = vrot.slane %v37, %v118
    %v120 = vlaneseq
    %v121 = vshrl.u32 %v120, 7
    %v122 = vsub.s32 2, %v121
    %v123 = vrot.slane %v37, %v122
    %v124 = vlaneseq
    %v125 = vshrl.u32 %v124, 7
    %v126 = vsub.s32 3, %v125
    %v127 = vrot.slane %v37, %v126
    %v132 = vmul.f32 %v97, %v115
    %v133 = vmul.f32 %v97, %v119
    %v134 = vmul.f32 %v97, %v123
    %v135 = vmul.f32 %v97, %v127
    %v136 = vmul.f32 %v101, %v115
    %v137 = vmul.f32 %v101, %v119
    %v138 = vmul.f32 %v101, %v123
    %v139 = vmul.f32 %v101, %v127
    %v140 = vmul.f32 %v105, %v115
    %v141 = vmul.f32 %v105, %v119
    %v142 = vmul.f32 %v105, %v123
    %v143 = vmul.f32 %v105, %v127
    %v144 = vmul.f32 %v109, %v115
    %v145 = vmul.f32 %v109, %v119
    %v146 = vmul.f32 %v109, %v123
    %v147 = vmul.f32 %v109, %v127
    %v148 = vadd.f32 %v79, %v132
    %v149 = vadd.f32 %v80, %v133
    %v150 = vadd.f32 %v81, %v134
    %v151 = vadd.f32 %v82, %v135
    %v152 = vadd.f32 %v83, %v136
    %v153 = vadd.f32 %v84, %v137
    %v154 = vadd.f32 %v85, %v138
    %v155 = vadd.f32 %v86, %v139
    %v156 = vadd.f32 %v87, %v140
    %v157 = vadd.f32 %v88, %v141
    %v158 = vadd.f32 %v89, %v142
    %v159 = vadd.f32 %v90, %v143
    %v160 = vadd.f32 %v91, %v144
    %v161 = vadd.f32 %v92, %v145
    %v162 = vadd.f32 %v93, %v146
    %v163 = vadd.f32 %v94, %v147
    %165 = vset.pattern.permute.xlu0 0
    %166 = vperm.xlu0 %165, %v26
    %v167 = vpop.permute.xlu0 %166
    %170 = vset.pattern.permute.xlu0 0
    %171 = vperm.xlu0 %170, %v27
    %v172 = vpop.permute.xlu0 %171
    %175 = vset.pattern.permute.xlu0 0
    %176 = vperm.xlu0 %175, %v28
    %v177 = vpop.permute.xlu0 %176
    %180 = vset.pattern.permute.xlu0 0
    %181 = vperm.xlu0 %180, %v29
    %v182 = vpop.permute.xlu0 %181
    %v184 = vadd.f32 %v148, %v167
    %v185 = vadd.f32 %v149, %v167
    %v186 = vadd.f32 %v150, %v167
    %v187 = vadd.f32 %v151, %v167
    %v188 = vadd.f32 %v152, %v172
    %v189 = vadd.f32 %v153, %v172
    %v190 = vadd.f32 %v154, %v172
    %v191 = vadd.f32 %v155, %v172
    %v192 = vadd.f32 %v156, %v177
    %v193 = vadd.f32 %v157, %v177
    %v194 = vadd.f32 %v158, %v177
    %v195 = vadd.f32 %v159, %v177
    %v196 = vadd.f32 %v160, %v182
    %v197 = vadd.f32 %v161, %v182
    %v198 = vadd.f32 %v162, %v182
    %v199 = vadd.f32 %v163, %v182
    %v200 = vtanh.pop %v184
    %v201 = vtanh.pop %v185
    %v202 = vtanh.pop %v186
    %v203 = vtanh.pop %v187
    %v204 = vtanh.pop %v188
    %v205 = vtanh.pop %v189
    %v206 = vtanh.pop %v190
    %v207 = vtanh.pop %v191
    %v208 = vtanh.pop %v192
    %v209 = vtanh.pop %v193
    %v210 = vtanh.pop %v194
    %v211 = vtanh.pop %v195
    %v212 = vtanh.pop %v196
    %v213 = vtanh.pop %v197
    %v214 = vtanh.pop %v198
    %v215 = vtanh.pop %v199
    %217 = vset.pattern.permute.xlu0 0
    %218 = vperm.xlu0 %217, %v30
    %v219 = vpop.permute.xlu0 %218
    %222 = vset.pattern.permute.xlu0 0
    %223 = vperm.xlu0 %222, %v31
    %v224 = vpop.permute.xlu0 %223
    %227 = vset.pattern.permute.xlu0 0
    %228 = vperm.xlu0 %227, %v32
    %v229 = vpop.permute.xlu0 %228
    %232 = vset.pattern.permute.xlu0 0
    %233 = vperm.xlu0 %232, %v33
    %v234 = vpop.permute.xlu0 %233
    %v236 = vmul.f32 %v200, %v219
    %v237 = vmul.f32 %v201, %v219
    %v238 = vmul.f32 %v202, %v219
    %v239 = vmul.f32 %v203, %v219
    %v240 = vmul.f32 %v204, %v224
    %v241 = vmul.f32 %v205, %v224
    %v242 = vmul.f32 %v206, %v224
    %v243 = vmul.f32 %v207, %v224
    %v244 = vmul.f32 %v208, %v229
    %v245 = vmul.f32 %v209, %v229
    %v246 = vmul.f32 %v210, %v229
    %v247 = vmul.f32 %v211, %v229
    %v248 = vmul.f32 %v212, %v234
    %v249 = vmul.f32 %v213, %v234
    %v250 = vmul.f32 %v214, %v234
    %v251 = vmul.f32 %v215, %v234
    %v252 = vadd.f32 %v236, %v240
    %v253 = vadd.f32 %v252, %v244
    %v254 = vadd.f32 %v253, %v248
    %v255 = vrot.slane %v254, 4
    %v256 = vadd.f32 %v254, %v255
    %v257 = vrot.slane %v256, 2
    %v258 = vadd.f32 %v256, %v257
    %v259 = vrot.slane %v258, 1
    %v260 = vadd.f32 %v258, %v259
    %v261 = vadd.f32 %v237, %v241
    %v262 = vadd.f32 %v261, %v245
    %v263 = vadd.f32 %v262, %v249
    %v264 = vrot.slane %v263, 4
    %v265 = vadd.f32 %v263, %v264
    %v266 = vrot.slane %v265, 2
    %v267 = vadd.f32 %v265, %v266
    %v268 = vrot.slane %v267, 1
    %v269 = vadd.f32 %v267, %v268
    %v270 = vadd.f32 %v238, %v242
    %v271 = vadd.f32 %v270, %v246
    %v272 = vadd.f32 %v271, %v250
    %v273 = vrot.slane %v272, 4
    %v274 = vadd.f32 %v272, %v273
    %v275 = vrot.slane %v274, 2
    %v276 = vadd.f32 %v274, %v275
    %v277 = vrot.slane %v276, 1
    %v278 = vadd.f32 %v276, %v277
    %v279 = vadd.f32 %v239, %v243
    %v280 = vadd.f32 %v279, %v247
    %v281 = vadd.f32 %v280, %v251
    %v282 = vrot.slane %v281, 4
    %v283 = vadd.f32 %v281, %v282
    %v284 = vrot.slane %v283, 2
    %v285 = vadd.f32 %v283, %v284
    %v286 = vrot.slane %v285, 1
    %v287 = vadd.f32 %v285, %v286
    %v288 = vstv %s34
    %v289 = vadd.f32 %v260, %v288
    %v290 = vadd.f32 %v269, %v288
    %v291 = vadd.f32 %v278, %v288
    %v292 = vadd.f32 %v287, %v288
    %v293 = vsub.f32 0.0, %v289
    %v294 = vsub.f32 0.0, %v290
    %v295 = vsub.f32 0.0, %v291
    %v296 = vsub.f32 0.0, %v292
    %v297 = vmul.f32 %v293, 1.442695
    %v298 = vpow.pop %v297
    %v299 = vmul.f32 %v294, 1.442695
    %v300 = vpow.pop %v299
    %v301 = vmul.f32 %v295, 1.442695
    %v302 = vpow.pop %v301
    %v303 = vmul.f32 %v296, 1.442695
    %v304 = vpow.pop %v303
    %v305 = vadd.f32 %v298, 1.0
    %v306 = vadd.f32 %v300, 1.0
    %v307 = vadd.f32 %v302, 1.0
    %v308 = vadd.f32 %v304, 1.0
    %v309 = vrcp.pop %v305
    %v310 = vrcp.pop %v306
    %v311 = vrcp.pop %v307
    %v312 = vrcp.pop %v308
    %v313 = vmul.f32 %v305, %v309
    %v314 = vmul.f32 %v306, %v310
    %v315 = vmul.f32 %v307, %v311
    %v316 = vmul.f32 %v308, %v312
    %v317 = vsub.f32 2.0, %v313
    %v318 = vsub.f32 2.0, %v314
    %v319 = vsub.f32 2.0, %v315
    %v320 = vsub.f32 2.0, %v316
    %v321 = vmul.f32 %v309, %v317
    %v322 = vmul.f32 %v310, %v318
    %v323 = vmul.f32 %v311, %v319
    %v324 = vmul.f32 %v312, %v320
    %v329 = vcombine.low %v321, %v322
    %v330 = vcombine.low %v323, %v324
    %v332 = vunpack.c.l.s4 1966171168
    %v333 = vunpack.c.0.s8 %v332
    %v334 = vlaneseq
    %v335 = vshrl.u32 %v334, 7
    %v336 = vsub.s32 %v333, %v335
    %v337 = vrot.slane %v329, %v336
    %v339 = vunpack.c.l.s4 1966171168
    %v340 = vunpack.c.0.s8 %v339
    %v341 = vlaneseq
    %v342 = vshrl.u32 %v341, 7
    %v343 = vsub.s32 %v340, %v342
    %v344 = vrot.slane %v330, %v343
    %v345 = vcombine.low %v337, %v344
    %v347 = vunpack.c.l.s4 1966171168
    %v348 = vunpack.c.0.s8 %v347
    %v349 = vlaneseq
    %v350 = vshrl.u32 %v349, 7
    %v351 = vsub.s32 %v348, %v350
    %v352 = vrot.slane %v345, %v351
    %v354 = vlaneseq
    %vm355 = vcmp.ge.s32.totalorder %v354, 0
    %vm356 = vcmp.lt.s32.totalorder %v354, 512
    %vm357 = vmand %vm355, %vm356
    %358 = vst.msk [vmem:[#allocation3] sm:$0xf] %vm357, %v352
    // Predicated region
    $region22: #{tpu_custom_call.1} parent=1 // pred_check
      _
    $region23: #{tpu_custom_call.1} parent=1 // pred_check_branch
      %360 = sbr.rel (0) target = $region25
    $region24: #{tpu_custom_call.1} parent=1 // pred_region
      %s362 = ssub.s32 64, 64
      %363 = vsyncadd [#allocation4], %s362
      %s365 = sshll.u32 [#allocation3], 4
      %s366 = int_to_ptr.vmem [resolvable:$true] %s365
      %368 = dma.vmem_to_hbm [thread:$0]  %s366, 64, %s5, [#allocation4]
    $region25: #{tpu_custom_call.1} parent=1 // pred_fallthru
      _
    // Predicated region
    $region26: #{tpu_custom_call.1} parent=1 // pred_check
      _
    $region27: #{tpu_custom_call.1} parent=1 // pred_check_branch
      %370 = sbr.rel (0) target = $region29
    $region28: #{tpu_custom_call.1} parent=1 // pred_region
      %371 = dma.done [#allocation4], 64
    $region29: #{tpu_custom_call.1} parent=1 // pred_fallthru
      _
    %372 = vsyncpa [#allocation4], 1

</llo_original>
